<compile_context>
chip_gen: v7x
topology: tpu7x:2x2x1
jax: 0.10.0
libtpu: 0.0.40
codegen_flags: <defaults>
</compile_context>

<pallas_src>
import functools

import jax
import jax.numpy as jnp
from jax.experimental import pallas as pl
from jax.experimental.pallas import tpu as pltpu


def _ce_label_smooth_kernel(logits_ref, xlab_ref, partial_ref, *,
                            epsilon, num_classes, batch, tile_batch):
    x = logits_ref[...].astype(jnp.float32)                 # (TB, K) f32
    tb = x.shape[0]
    x_label = xlab_ref[...]                                  # (TB, 1) f32 (pre-gathered)

    # Row-wise stable logsumexp (lane-axis reduce first -> (TB, 1)).
    m = jnp.max(x, axis=1, keepdims=True)                    # (TB, 1)
    e = jnp.exp(x - m)                                       # only full-size EUP pass
    lse = m + jnp.log(jnp.sum(e, axis=1, keepdims=True))     # (TB, 1)

    # Row sum of raw logits (for the uniform eps/K part of the target).
    row_sum = jnp.sum(x, axis=1, keepdims=True)              # (TB, 1)

    # loss_row = -sum_k [(1-eps)*onehot + eps/K] * (x - lse)
    #          = lse - (1-eps)*x[label] - (eps/K)*row_sum
    loss_rows = (lse
                 - (1.0 - epsilon) * x_label
                 - (epsilon / num_classes) * row_sum)        # (TB, 1)

    # Mask rows beyond the true batch (last partial tile).  Keep this as a
    # select applied after the reductions (padded rows may hold Inf/NaN).
    row_ids = (pl.program_id(0) * tile_batch
               + jax.lax.broadcasted_iota(jnp.int32, (tb, 1), 0))
    loss_rows = jnp.where(row_ids < batch, loss_rows, 0.0)

    partial_ref[0, 0] = jnp.sum(loss_rows)


def _tpu_kind():
    try:
        return jax.devices()[0].device_kind.lower()
    except Exception:  # pragma: no cover - defensive
        return ""


def _default_tile_batch(batch, num_classes, in_bytes, tile_budget_bytes):
    # Per-tile VMEM footprint (per perf review):
    #   2 * TB*K*in_bytes   double-buffered input stream
    # + ~3 * TB*K*4         f32 upcast of x, exp temp, slack
    bytes_per_row = num_classes * (2 * in_bytes + 12)
    tb = tile_budget_bytes // max(bytes_per_row, 1)
    tb = min(tb, 4096)                 # no artificial 512 cap; amortize step cost
    if batch >= 1024:
        # Keep >= 4 tiles so the "parallel" grid axis actually shards
        # across TensorCores on megacore parts.
        tb = min(tb, pl.cdiv(batch, 4))
    return max(8, (tb // 8) * 8)


def cross_entropy_label_smooth(logits, labels, *, epsilon=0.1, tile_batch=None):
    """logits: (B, K) float (f32 or bf16); labels: (B,) int -> scalar f32 loss."""
    batch, num_classes = logits.shape
    labels2d = labels.astype(jnp.int32).reshape(batch, 1)

    # O(B) wrapper-side gather of x[row, label[row]] -> (B, 1) f32.
    x_label = jnp.take_along_axis(logits, labels2d, axis=1).astype(jnp.float32)

    # Generation-aware VMEM limits (v7x: 64 MiB physical; v5e/v6e: 128 MiB).
    is_v7 = "v7" in _tpu_kind()
    vmem_limit_bytes = (48 if is_v7 else 64) * 1024 * 1024
    tile_budget_bytes = (24 if is_v7 else 32) * 1024 * 1024

    in_bytes = jnp.dtype(logits.dtype).itemsize
    if tile_batch is None:
        tile_batch = _default_tile_batch(batch, num_classes, in_bytes,
                                         tile_budget_bytes)
    # Respect the (8, 128) rule: tile is a multiple of 8, or the full batch.
    tile_batch = batch if batch <= tile_batch else int(tile_batch)
    if tile_batch < batch:
        assert tile_batch % 8 == 0, "tile_batch must be a multiple of 8"
    num_tiles = pl.cdiv(batch, tile_batch)

    kernel = functools.partial(
        _ce_label_smooth_kernel,
        epsilon=float(epsilon),
        num_classes=int(num_classes),
        batch=int(batch),
        tile_batch=int(tile_batch),
    )

    partials = pl.pallas_call(
        kernel,
        out_shape=jax.ShapeDtypeStruct((num_tiles, 1), jnp.float32),
        grid=(num_tiles,),
        in_specs=[
            pl.BlockSpec((tile_batch, num_classes), lambda i: (i, 0)),
            pl.BlockSpec((tile_batch, 1), lambda i: (i, 0)),
        ],
        out_specs=pl.BlockSpec((1, 1), lambda i: (i, 0),
                               memory_space=pltpu.SMEM),
        compiler_params=pltpu.CompilerParams(
            dimension_semantics=("parallel",),
            vmem_limit_bytes=vmem_limit_bytes,
        ),
    )(logits, x_label)

    # Tiny final reduce + mean-over-batch scale outside the kernel.
    return jnp.sum(partials) * (1.0 / batch)


def _reference(logits, labels, epsilon=0.1):
    b, k = logits.shape
    lp = jax.nn.log_softmax(logits.astype(jnp.float32), axis=1)
    onehot = jax.nn.one_hot(labels, k, dtype=jnp.float32)
    t = (1.0 - epsilon) * onehot + epsilon / k
    return jnp.sum(jnp.mean(-t * lp, axis=0))


if __name__ == "__main__":
    key = jax.random.PRNGKey(0)
    k_logits, k_labels, k_logits2, k_labels2 = jax.random.split(key, 4)

    # Test 1: f32 logits, single full-batch tile.
    batch, num_classes = 8, 128
    logits = jax.random.normal(k_logits, (batch, num_classes), dtype=jnp.float32)
    labels = jax.random.randint(k_labels, (batch,), 0, num_classes, dtype=jnp.int32)
    loss = jax.block_until_ready(cross_entropy_label_smooth(logits, labels, epsilon=0.1))
    ref = _reference(logits, labels, epsilon=0.1)
    assert jnp.allclose(loss, ref, atol=1e-5, rtol=1e-5), (loss, ref)

    # Test 2: bf16 logits, multi-tile with a partial (masked) last tile.
    batch2, num_classes2 = 20, 256
    logits2 = jax.random.normal(k_logits2, (batch2, num_classes2),
                                dtype=jnp.float32).astype(jnp.bfloat16)
    labels2 = jax.random.randint(k_labels2, (batch2,), 0, num_classes2,
                                 dtype=jnp.int32)
    loss2 = jax.block_until_ready(
        cross_entropy_label_smooth(logits2, labels2, epsilon=0.1, tile_batch=8))
    ref2 = _reference(logits2, labels2, epsilon=0.1)
    assert jnp.allclose(loss2, ref2, atol=1e-4, rtol=1e-4), (loss2, ref2)

    print("KERNEL_OK")
</pallas_src>

<mosaic_0001>
module attributes {stable_mosaic.version = 11 : i64} {
  func.func @_ce_label_smooth_kernel(%arg0: i32, %arg1: memref<8x128xf32, #tpu.memory_space<vmem>>, %arg2: memref<8x1xf32, #tpu.memory_space<vmem>>, %arg3: memref<1x1xf32, #tpu.memory_space<smem>>) attributes {dimension_semantics = [#tpu.dimension_semantics<parallel>], iteration_bounds = array<i64: 1>, scalar_prefetch = 0 : i64, scratch_operands = 0 : i64, tpu.core_type = #tpu.core_type<tc>, window_params = [{transform_indices = @transform_0, window_bounds = array<i64: 8, 128>}, {transform_indices = @transform_1, window_bounds = array<i64: 8, 1>}, {transform_indices = @transform_2, window_bounds = array<i64: 1, 1>}]} {
    %c0 = arith.constant 0 : index
    %c0_0 = arith.constant 0 : index
    %0 = vector.load %arg1[%c0, %c0_0] : memref<8x128xf32, #tpu.memory_space<vmem>>, vector<8x128xf32>
    %c0_1 = arith.constant 0 : index
    %c0_2 = arith.constant 0 : index
    %1 = vector.load %arg2[%c0_1, %c0_2] : memref<8x1xf32, #tpu.memory_space<vmem>>, vector<8x1xf32>
    %cst = arith.constant dense<0xFF800000> : vector<8xf32>
    %2 = vector.multi_reduction <maximumf>, %0, %cst [1] : vector<8x128xf32> to vector<8xf32>
    %3 = vector.shape_cast %2 : vector<8xf32> to vector<8x1xf32>
    %4 = vector.broadcast %3 : vector<8x1xf32> to vector<8x128xf32>
    %5 = arith.subf %0, %4 : vector<8x128xf32>
    %6 = math.exp %5 : vector<8x128xf32>
    %cst_3 = arith.constant dense<0.000000e+00> : vector<8xf32>
    %7 = vector.multi_reduction <add>, %6, %cst_3 [1] : vector<8x128xf32> to vector<8xf32>
    %8 = vector.shape_cast %7 : vector<8xf32> to vector<8x1xf32>
    %9 = math.log %8 : vector<8x1xf32>
    %10 = arith.addf %3, %9 : vector<8x1xf32>
    %cst_4 = arith.constant dense<0.000000e+00> : vector<8xf32>
    %11 = vector.multi_reduction <add>, %0, %cst_4 [1] : vector<8x128xf32> to vector<8xf32>
    %12 = vector.shape_cast %11 : vector<8xf32> to vector<8x1xf32>
    %cst_5 = arith.constant 0.899999976 : f32
    %13 = vector.broadcast %cst_5 : f32 to vector<8x1xf32>
    %14 = arith.mulf %13, %1 : vector<8x1xf32>
    %15 = arith.subf %10, %14 : vector<8x1xf32>
    %cst_6 = arith.constant 7.812500e-04 : f32
    %16 = vector.broadcast %cst_6 : f32 to vector<8x1xf32>
    %17 = arith.mulf %16, %12 : vector<8x1xf32>
    %18 = arith.subf %15, %17 : vector<8x1xf32>
    %c8_i32 = arith.constant 8 : i32
    %19 = arith.muli %arg0, %c8_i32 : i32
    %20 = tpu.iota {dimensions = array<i32: 0>} : vector<8x1xi32>
    %21 = vector.broadcast %19 : i32 to vector<8x1xi32>
    %22 = arith.addi %21, %20 : vector<8x1xi32>
    %c8_i32_7 = arith.constant 8 : i32
    %23 = vector.broadcast %c8_i32_7 : i32 to vector<8x1xi32>
    %24 = arith.cmpi slt, %22, %23 : vector<8x1xi32>
    %cst_8 = arith.constant 0.000000e+00 : f32
    %25 = vector.broadcast %cst_8 : f32 to vector<8x1xf32>
    %26 = arith.select %24, %18, %25 : vector<8x1xi1>, vector<8x1xf32>
    %27 = vector.shape_cast %26 : vector<8x1xf32> to vector<1x8x1xf32>
    %cst_9 = arith.constant dense<0.000000e+00> : vector<1xf32>
    %28 = vector.multi_reduction <add>, %27, %cst_9 [1, 2] : vector<1x8x1xf32> to vector<1xf32>
    %29 = vector.shape_cast %28 : vector<1xf32> to vector<1x1x1xf32>
    %30 = vector.extract %29[0, 0, 0] : f32 from vector<1x1x1xf32>
    %c0_10 = arith.constant 0 : index
    %c0_11 = arith.constant 0 : index
    %31 = memref.load %arg3[%c0_10, %c0_11] : memref<1x1xf32, #tpu.memory_space<smem>>
    memref.store %30, %arg3[%c0_10, %c0_11] : memref<1x1xf32, #tpu.memory_space<smem>>
    return
  }
  func.func @transform_0(%arg0: i32) -> (i32, i32) {
    %c0_i32 = arith.constant 0 : i32
    %c0_i32_0 = arith.constant 0 : i32
    return %arg0, %c0_i32 : i32, i32
  }
  func.func @transform_1(%arg0: i32) -> (i32, i32) {
    %c0_i32 = arith.constant 0 : i32
    %c0_i32_0 = arith.constant 0 : i32
    return %arg0, %c0_i32 : i32, i32
  }
  func.func @transform_2(%arg0: i32) -> (i32, i32) {
    %c0_i32 = arith.constant 0 : i32
    %c0_i32_0 = arith.constant 0 : i32
    return %arg0, %c0_i32 : i32, i32
  }
}

</mosaic_0001>

<llo_original>
// kernel: tpu_custom_call.1
$region0: #{tpu_custom_call.1}
  #allocation0 [shape = 'u32[]', space=smem, size = 0x4, offset = 0x4, fixed_abs, tag = 'smem constant byte address 0x4 - core index']
  #allocation1 [shape = 'u32[144,128]{1,0:T(1,128)}', space=vmem, size = 0x12000, scoped, tag = 'internal scratch']
  %s0 = inlined_call_operand.hbm [shape: f32[8,128], index: 0, kind: input, shape index: {}]
  %s1 = inlined_call_operand.hbm [shape: f32[8,1], index: 1, kind: input, shape index: {}]
  %s2 = inlined_call_operand.hbm [shape: f32[1,1], index: 2, kind: output, shape index: {}]
  %s3 = sld [smem:[#allocation0]]
  $region26: #{tpu_custom_call.1} parent=0
    _
  %s5 = ssub.s32 1, %s3
  %s6 = scalar_select 0, %s5, %s3
  $region1: #{tpu_custom_call.1} parent=0
    #allocation2 [shape = 'u8[4096]{0}', space=vmem, size = 0x1000, scoped, tag = 'input window, operand 0, single buffered']
    #allocation3 [shape = 's32[1]{0}', space=sflag, size = 0x4, scoped, tag = 'scoped memory for tpu_custom_call.1']
    #allocation4 [shape = 's32[1]{0}', space=sflag, size = 0x4, scoped, tag = 'scoped memory for tpu_custom_call.1']
    #allocation5 [shape = 'u8[4096]{0}', space=vmem, size = 0x1000, scoped, tag = 'input window, operand 1, single buffered']
    #allocation6 [shape = 's32[1]{0}', space=sflag, size = 0x4, scoped, tag = 'scoped memory for tpu_custom_call.1']
    #allocation7 [shape = 'u8[512]{0}', space=smem, size = 0x200, scoped, tag = 'output window, operand 0, single buffered']
    %7 = vsyncpa [#allocation3], 0
    %8 = vsyncpa [#allocation6], 0
    %9 = vsyncpa [#allocation4], 0
    // Predicated region
    $region2: #{tpu_custom_call.1} parent=1 // pred_check
      _
    $region3: #{tpu_custom_call.1} parent=1 // pred_check_branch
      %11 = sbr.rel (0) target = $region5
    $region4: #{tpu_custom_call.1} parent=1 // pred_region
      %s13 = ssub.s32 128, 128
      %14 = vsyncadd [#allocation3], %s13
      %s16 = sshll.u32 [#allocation2], 4
      %s17 = int_to_ptr.vmem [resolvable:$true] %s16
      %19 = dma.hbm_to_vmem [thread:$0]  %s0, 128, %s17, [#allocation3]
    $region5: #{tpu_custom_call.1} parent=1 // pred_fallthru
      _
    // Predicated region
    $region6: #{tpu_custom_call.1} parent=1 // pred_check
      _
    $region7: #{tpu_custom_call.1} parent=1 // pred_check_branch
      %21 = sbr.rel (0) target = $region9
    $region8: #{tpu_custom_call.1} parent=1 // pred_region
      %s23 = ssub.s32 128, 128
      %24 = vsyncadd [#allocation6], %s23
      %s26 = sshll.u32 [#allocation5], 4
      %s27 = int_to_ptr.vmem [resolvable:$true] %s26
      %29 = dma.hbm_to_vmem [thread:$0]  %s1, 128, %s27, [#allocation6]
    $region9: #{tpu_custom_call.1} parent=1 // pred_fallthru
      _
    // Predicated region
    $region10: #{tpu_custom_call.1} parent=1 // pred_check
      _
    $region11: #{tpu_custom_call.1} parent=1 // pred_check_branch
      %31 = sbr.rel (0) target = $region13
    $region12: #{tpu_custom_call.1} parent=1 // pred_region
      %32 = dma.done [#allocation3], 128
    $region13: #{tpu_custom_call.1} parent=1 // pred_fallthru
      _
    // Predicated region
    $region14: #{tpu_custom_call.1} parent=1 // pred_check
      _
    $region15: #{tpu_custom_call.1} parent=1 // pred_check_branch
      %34 = sbr.rel (0) target = $region17
    $region16: #{tpu_custom_call.1} parent=1 // pred_region
      %35 = dma.done [#allocation6], 128
    $region17: #{tpu_custom_call.1} parent=1 // pred_fallthru
      _
    %v36 = vld [vmem:[#allocation2] sm:$0xff]
    %v37 = vld [vmem:[#allocation5] sm:$0xff]
    %38 = vmax.xlane.f32.xlu0 %v36
    %v39 = vpop.xlane.xlu0 %38
    %v40 = vsub.f32 %v36, %v39
    %v41 = vmul.f32 %v40, 1.442695
    %v42 = vpow.pop %v41
    %43 = vadd.xlane.f32.xlu0 %v42
    %v44 = vpop.xlane.xlu0 %43
    %v45 = vlog2.pop %v44
    %v46 = vmul.f32 %v45, 0.6931472
    %v47 = vadd.f32 %v39, %v46
    %48 = vadd.xlane.f32.xlu0 %v36
    %v49 = vpop.xlane.xlu0 %48
    %v50 = vmul.f32 %v37, 0.9
    %v51 = vsub.f32 %v47, %v50
    %v52 = vmul.f32 %v49, 0.00078125
    %v53 = vsub.f32 %v51, %v52
    %s54 = smul.u32 0, 8
    %v55 = vlaneseq
    %v56 = vshrl.u32 %v55, 7
    %v57 = vstv %s54
    %v58 = vadd.s32 %v57, %v56
    %vm59 = vcmp.lt.s32.totalorder %v58, 8
    %v60 = vsel %vm59, %v53, 0.0
    %vm61 = vcmask 7168
    %v62 = vsel %vm61, %v60, 0.0
    %63 = vadd.xlane.f32.xlu0 %v62
    %v64 = vpop.xlane.xlu0 %63
    %v65 = vrot.slane %v64, 4
    %v66 = vadd.f32 %v64, %v65
    %v67 = vrot.slane %v66, 2
    %v68 = vadd.f32 %v66, %v67
    %v69 = vrot.slane %v68, 1
    %v70 = vadd.f32 %v68, %v69
    %s71 = vtos %v70
    %s72 = scalar_lea.smem [#allocation7], 0
    %73 = sst [smem:[%s72]] %s71
    // Predicated region
    $region18: #{tpu_custom_call.1} parent=1 // pred_check
      _
    $region19: #{tpu_custom_call.1} parent=1 // pred_check_branch
      %75 = sbr.rel (0) target = $region21
    $region20: #{tpu_custom_call.1} parent=1 // pred_region
      %s77 = ssub.s32 16, 16
      %78 = vsyncadd [#allocation4], %s77
      %81 = dma.smem_to_hbm [#allocation7], 16, %s2, [#allocation4]
    $region21: #{tpu_custom_call.1} parent=1 // pred_fallthru
      _
    // Predicated region
    $region22: #{tpu_custom_call.1} parent=1 // pred_check
      _
    $region23: #{tpu_custom_call.1} parent=1 // pred_check_branch
      %83 = sbr.rel (0) target = $region25
    $region24: #{tpu_custom_call.1} parent=1 // pred_region
      %84 = dma.done [#allocation4], 16
    $region25: #{tpu_custom_call.1} parent=1 // pred_fallthru
      _
    %85 = sfence
    %86 = vsyncpa [#allocation3], 1
    %87 = vsyncpa [#allocation6], 1
    %88 = vsyncpa [#allocation4], 1

</llo_original>
